<compile_context>
chip_gen: v6e
topology: v6e:2x2x1
jax: 0.10.0
libtpu: 0.0.40
codegen_flags: <defaults>
</compile_context>

<pallas_src>
import math

import jax
import jax.numpy as jnp
from jax import lax
from jax.experimental import pallas as pl
from jax.experimental.pallas import tpu as pltpu  # noqa: F401  (TPU backend)

# ---- model hyperparameters (small, deterministic synthetic instantiation) ----
B = 2           # batch
T = 8           # sequence length (frames)
N_MELS = 40     # input_mels
D = 32          # d_model
NHEAD = 2       # attention heads
HD = D // NHEAD
FF = 64         # feed-forward dim
NSPK = 10       # number of speakers
EPS = 1e-5

LANES = 128
BT = B * T              # 16 stacked (batch, time) rows
HBT = NHEAD * BT        # 32 head-stacked rows

# ---- fused first-matmul layout -------------------------------------------------
# x_bd (HBT, XCOLS): rows 0..BT-1 carry x in cols [0, N_MELS) and a 1 in col ONE0;
#                    rows BT..HBT-1 carry x in cols [N_MELS, 2*N_MELS) and a 1 in ONE1.
# W_big (XCOLS, 128): rows [h*N_MELS, (h+1)*N_MELS) = head-h weight block,
#                     row ONE0/ONE1 = per-head folded bias row.
XCOLS = 2 * N_MELS + 8          # 88 (8-aligned; last rows zero)
ONE0 = 2 * N_MELS               # 80
ONE1 = 2 * N_MELS + 1           # 81

# lanes of the fused matmul output
L_H = 0                          # h                      lanes [0, D)
L_Q = D                          # q (pre-scaled)         lanes [D, D+HD)
L_K = D + HD                     # k                      lanes [D+HD, D+2HD)
L_VO = D + 2 * HD                # v @ Wo (+ b_o/NHEAD)   lanes [D+2HD, 2D+2HD)

# ---- second parameter slab (all row offsets 8-aligned) --------------------------
R_W1 = 0            # (D, FF)          rows   0..31
R_W2 = 32           # (FF, D)          rows  32..95
R_CLS = 96          # (D, 128)         rows  96..127  (zero past NSPK)
R_MASK = 128        # (HBT, HBT)       rows 128..159  additive attention mask
R_POOL = 160        # (8, BT)          rows 160..167  mean-pool matrix (rows >= B zero)
R_VEC = 168         # per-row vectors  rows 168..174
(V_G1, V_BE1, V_B1, V_B2, V_G2, V_BE2, V_BCLS) = range(7)
P2_ROWS = 176


def _layernorm(x, gamma, beta):
    mu = jnp.mean(x, axis=-1, keepdims=True)
    var = jnp.mean((x - mu) ** 2, axis=-1, keepdims=True)
    return (x - mu) * lax.rsqrt(var + EPS) * gamma + beta


# =================================== kernel =====================================
def model_kernel(x_ref, wbig_ref, p2_ref, out_ref):
    # x_ref: (HBT, XCOLS)  wbig_ref: (XCOLS, 128)  p2_ref: (P2_ROWS, 128)
    # out_ref: (8, 128) full tile (lanes >= NSPK / rows >= B are don't-care)

    # --- fused prenet + per-head Q/K/(V@Wo): ONE 128-lane-dense matmul -----------
    fused = jnp.dot(x_ref[...], wbig_ref[...],
                    preferred_element_type=jnp.float32)            # (HBT, 128)

    h = fused[0:BT, L_H:L_H + D]                                   # (BT, D)  prenet output
    q = fused[:, L_Q:L_Q + HD]                                     # (HBT, HD) head-stacked, pre-scaled
    k = fused[:, L_K:L_K + HD]                                     # (HBT, HD)
    vo = fused[:, L_VO:L_VO + D]                                   # (HBT, D)  = V @ Wo (+ b_o/NHEAD)

    # --- both heads in ONE score matmul / ONE softmax / ONE P@V ------------------
    s = lax.dot_general(q, k, (((1,), (1,)), ((), ())),
                        preferred_element_type=jnp.float32)        # (HBT, HBT)
    s = s + p2_ref[R_MASK:R_MASK + HBT, 0:HBT]                     # block-diag (head x utt) mask
    s = s - jnp.max(s, axis=-1, keepdims=True)
    e = jnp.exp(s)
    p = e / jnp.sum(e, axis=-1, keepdims=True)                     # exact divide (EUP slack anyway)

    pv = jnp.dot(p, vo, preferred_element_type=jnp.float32)        # (HBT, D)
    # head "concat" + output projection collapse to a sublane-block add
    attn = pv[0:BT, :] + pv[BT:HBT, :]                             # (BT, D), b_o already folded in

    g1 = p2_ref[R_VEC + V_G1:R_VEC + V_G1 + 1, 0:D]
    be1 = p2_ref[R_VEC + V_BE1:R_VEC + V_BE1 + 1, 0:D]
    h1 = _layernorm(h + attn, g1, be1)                             # post-norm #1

    # --- feed-forward: Linear(D->FF) -> ReLU -> Linear(FF->D) --------------------
    w1 = p2_ref[R_W1:R_W1 + D, 0:FF]
    b1 = p2_ref[R_VEC + V_B1:R_VEC + V_B1 + 1, 0:FF]
    w2 = p2_ref[R_W2:R_W2 + FF, 0:D]
    b2 = p2_ref[R_VEC + V_B2:R_VEC + V_B2 + 1, 0:D]
    ff = jnp.maximum(jnp.dot(h1, w1, preferred_element_type=jnp.float32) + b1, 0.0)
    ff = jnp.dot(ff, w2, preferred_element_type=jnp.float32) + b2

    g2 = p2_ref[R_VEC + V_G2:R_VEC + V_G2 + 1, 0:D]
    be2 = p2_ref[R_VEC + V_BE2:R_VEC + V_BE2 + 1, 0:D]
    h2 = _layernorm(h1 + ff, g2, be2)                              # post-norm #2

    # --- mean pooling over time via a constant matmul ----------------------------
    pool = p2_ref[R_POOL:R_POOL + 8, 0:BT]                         # (8, BT), rows >= B zero
    pooled = jnp.dot(pool, h2, preferred_element_type=jnp.float32)  # (8, D)

    # --- classifier: lane-dense, single full-tile store --------------------------
    w_cls = p2_ref[R_CLS:R_CLS + D, :]                             # (D, 128)
    b_cls = p2_ref[R_VEC + V_BCLS:R_VEC + V_BCLS + 1, :]           # (1, 128)
    out_ref[...] = jnp.dot(pooled, w_cls, preferred_element_type=jnp.float32) + b_cls


# ============================ host-side packing (run once) ======================
def pack_params(p):
    """Fold prenet/QKV/Wo (and all biases) into two f32 slabs. Run ONCE."""
    scale = 1.0 / math.sqrt(HD)
    w_pre, b_pre = p["w_pre"], p["b_pre"]
    w_q, w_k, w_v = (p["w_qkv"][:, i * D:(i + 1) * D] for i in range(3))
    b_q, b_k, b_v = (p["b_qkv"][:, i * D:(i + 1) * D] for i in range(3))
    w_o, b_o = p["w_o"], p["b_o"]

    w_big = jnp.zeros((XCOLS, LANES), jnp.float32)
    for hh in range(NHEAD):
        cs = slice(hh * HD, (hh + 1) * HD)
        wq_h = w_q[:, cs] * scale                         # fold 1/sqrt(HD) into Q
        wk_h = w_k[:, cs]
        wvo_h = w_v[:, cs] @ w_o[cs, :]                   # fold output projection into V
        wblk = jnp.concatenate(
            [w_pre, w_pre @ wq_h, w_pre @ wk_h, w_pre @ wvo_h], axis=1)       # (N_MELS, 96)
        bblk = jnp.concatenate(
            [b_pre,
             b_pre @ wq_h + b_q[:, cs] * scale,
             b_pre @ wk_h + b_k[:, cs],
             (b_pre @ w_v[:, cs] + b_v[:, cs]) @ w_o[cs, :] + b_o / NHEAD],    # softmax rows sum to 1
            axis=1)                                                            # (1, 96)
        w_big = w_big.at[hh * N_MELS:(hh + 1) * N_MELS, 0:2 * D + 2 * HD].set(wblk)
        w_big = w_big.at[ONE0 + hh, 0:2 * D + 2 * HD].set(bblk[0])

    # block-diagonal (same head AND same utterance) additive mask, 0 / -1e30 (f32-safe)
    idx = jnp.arange(HBT)
    head = idx // BT
    utt = (idx % BT) // T
    allowed = (head[:, None] == head[None, :]) & (utt[:, None] == utt[None, :])
    mask = jnp.where(allowed, 0.0, -1e30).astype(jnp.float32)

    # mean-pool matrix, padded to 8 rows so the last matmul yields a full output tile
    prow = jnp.arange(8)[:, None]
    pcol = jnp.arange(BT)[None, :] // T
    pool = jnp.where((prow == pcol) & (prow < B), 1.0 / T, 0.0).astype(jnp.float32)

    p2 = jnp.zeros((P2_ROWS, LANES), jnp.float32)
    p2 = p2.at[R_W1:R_W1 + D, 0:FF].set(p["w1"])
    p2 = p2.at[R_W2:R_W2 + FF, 0:D].set(p["w2"])
    p2 = p2.at[R_CLS:R_CLS + D, 0:NSPK].set(p["w_cls"])
    p2 = p2.at[R_MASK:R_MASK + HBT, 0:HBT].set(mask)
    p2 = p2.at[R_POOL:R_POOL + 8, 0:BT].set(pool)
    for i, name in ((V_G1, "g1"), (V_BE1, "be1"), (V_B1, "b1"),
                    (V_B2, "b2"), (V_G2, "g2"), (V_BE2, "be2")):
        vec = p[name]
        p2 = p2.at[R_VEC + i, 0:vec.shape[1]].set(vec[0])
    p2 = p2.at[R_VEC + V_BCLS, 0:NSPK].set(p["b_cls"][0])
    return w_big, p2


# ================================= forward (jitted) =============================
@jax.jit
def model_forward(mels, w_big, p2):
    """mels: (B, T, N_MELS) f32, slabs from pack_params -> logits (B, NSPK) f32."""
    x = mels.reshape(BT, N_MELS).astype(jnp.float32)
    # block-diagonal [x, 0; 0, x] plus per-head-block "ones" columns carrying the biases
    x_bd = jnp.zeros((HBT, XCOLS), jnp.float32)
    x_bd = x_bd.at[0:BT, 0:N_MELS].set(x)
    x_bd = x_bd.at[BT:HBT, N_MELS:2 * N_MELS].set(x)
    x_bd = x_bd.at[0:BT, ONE0].set(1.0)
    x_bd = x_bd.at[BT:HBT, ONE1].set(1.0)

    out = pl.pallas_call(
        model_kernel,
        out_shape=jax.ShapeDtypeStruct((8, LANES), jnp.float32),
        # no grid: whole batch in one invocation (working set ~160 KiB << VMEM).
        # TODO(synk): if B*T scales into the hundreds, add a parallel grid axis
        # over utterance blocks (v7x second TensorCore) and/or bf16 slabs.
    )(x_bd, w_big, p2)
    return out[:B, :NSPK]


# ================================ pure-JAX reference ============================
def model_reference(mels, p):
    """Mirrors PyTorch semantics (post-norm encoder layer, eval mode)."""
    h = mels @ p["w_pre"] + p["b_pre"]                            # (B, T, D)
    qkv = h @ p["w_qkv"] + p["b_qkv"]
    q, k, v = qkv[..., :D], qkv[..., D:2 * D], qkv[..., 2 * D:]
    qh = q.reshape(B, T, NHEAD, HD).transpose(0, 2, 1, 3)
    kh = k.reshape(B, T, NHEAD, HD).transpose(0, 2, 1, 3)
    vh = v.reshape(B, T, NHEAD, HD).transpose(0, 2, 1, 3)
    s = jnp.einsum("bhqd,bhkd->bhqk", qh, kh) / math.sqrt(HD)
    a = jax.nn.softmax(s, axis=-1)
    o = jnp.einsum("bhqk,bhkd->bhqd", a, vh).transpose(0, 2, 1, 3).reshape(B, T, D)
    o = o @ p["w_o"] + p["b_o"]
    h = _layernorm(h + o, p["g1"], p["be1"])
    ff = jax.nn.relu(h @ p["w1"] + p["b1"]) @ p["w2"] + p["b2"]
    h = _layernorm(h + ff, p["g2"], p["be2"])
    pooled = jnp.mean(h, axis=1)
    return pooled @ p["w_cls"] + p["b_cls"]


def init_params(key):
    ks = jax.random.split(key, 16)

    def lin(k, fan_in, shape):
        return jax.random.normal(k, shape, jnp.float32) / math.sqrt(fan_in)

    def vec(k, shape, scl=0.1):
        return scl * jax.random.normal(k, shape, jnp.float32)

    return {
        "w_pre": lin(ks[0], N_MELS, (N_MELS, D)), "b_pre": vec(ks[1], (1, D)),
        "w_qkv": lin(ks[2], D, (D, 3 * D)),       "b_qkv": vec(ks[3], (1, 3 * D)),
        "w_o":   lin(ks[4], D, (D, D)),           "b_o":   vec(ks[5], (1, D)),
        "g1":    1.0 + vec(ks[6], (1, D)),        "be1":   vec(ks[7], (1, D)),
        "w1":    lin(ks[8], D, (D, FF)),          "b1":    vec(ks[9], (1, FF)),
        "w2":    lin(ks[10], FF, (FF, D)),        "b2":    vec(ks[11], (1, D)),
        "g2":    1.0 + vec(ks[12], (1, D)),       "be2":   vec(ks[13], (1, D)),
        "w_cls": lin(ks[14], D, (D, NSPK)),       "b_cls": vec(ks[15], (1, NSPK)),
    }


if __name__ == "__main__":
    key = jax.random.PRNGKey(0)
    k_in, k_par = jax.random.split(key)
    mels = jax.random.normal(k_in, (B, T, N_MELS), jnp.float32)
    params = init_params(k_par)

    # pack ONCE outside the forward path; reference at full f32 matmul precision
    with jax.default_matmul_precision("highest"):
        w_big, p2 = pack_params(params)
        ref = model_reference(mels, params)

    logits = model_forward(mels, w_big, p2)
    jax.block_until_ready(logits)

    assert logits.shape == (B, NSPK), logits.shape
    # Kernel has no approximations (exact softmax divide); the bound only covers
    # f32 MXU rounding + the host-side weight-folding reassociation.
    max_err = float(jnp.max(jnp.abs(logits - ref)))
    assert jnp.allclose(logits, ref, atol=1e-3, rtol=1e-3), max_err
    print("KERNEL_OK")
</pallas_src>

<mosaic_0001>
module attributes {stable_mosaic.version = 11 : i64} {
  func.func @model_kernel(%arg0: memref<32x88xf32, #tpu.memory_space<vmem>>, %arg1: memref<88x128xf32, #tpu.memory_space<vmem>>, %arg2: memref<176x128xf32, #tpu.memory_space<vmem>>, %arg3: memref<8x128xf32, #tpu.memory_space<vmem>>) attributes {dimension_semantics = [], scalar_prefetch = 0 : i64, scratch_operands = 0 : i64, tpu.core_type = #tpu.core_type<tc>} {
    %c0 = arith.constant 0 : index
    %c0_0 = arith.constant 0 : index
    %0 = vector.load %arg0[%c0, %c0_0] : memref<32x88xf32, #tpu.memory_space<vmem>>, vector<32x88xf32>
    %c0_1 = arith.constant 0 : index
    %c0_2 = arith.constant 0 : index
    %1 = vector.load %arg1[%c0_1, %c0_2] : memref<88x128xf32, #tpu.memory_space<vmem>>, vector<88x128xf32>
    %cst = arith.constant dense<0.000000e+00> : vector<32x128xf32>
    %2 = tpu.matmul %0, %1, %cst {dimension_numbers = #tpu.dot_dimension_numbers<[1], [0], [0], [1], [0, 0, 1, 1], [], []>} : vector<32x88xf32>, vector<88x128xf32>, vector<32x128xf32> -> vector<32x128xf32>
    %3 = vector.extract_strided_slice %2 {offsets = [0, 0], sizes = [16, 32], strides = [1, 1]} : vector<32x128xf32> to vector<16x32xf32>
    %4 = vector.extract_strided_slice %2 {offsets = [0, 32], sizes = [32, 16], strides = [1, 1]} : vector<32x128xf32> to vector<32x16xf32>
    %5 = vector.extract_strided_slice %2 {offsets = [0, 48], sizes = [32, 16], strides = [1, 1]} : vector<32x128xf32> to vector<32x16xf32>
    %6 = vector.extract_strided_slice %2 {offsets = [0, 64], sizes = [32, 32], strides = [1, 1]} : vector<32x128xf32> to vector<32x32xf32>
    %cst_3 = arith.constant dense<0.000000e+00> : vector<32x32xf32>
    %7 = tpu.matmul %4, %5, %cst_3 {dimension_numbers = #tpu.dot_dimension_numbers<[1], [1], [0], [0], [0, 0, 1, 0], [], []>} : vector<32x16xf32>, vector<32x16xf32>, vector<32x32xf32> -> vector<32x32xf32>
    %c128 = arith.constant 128 : index
    %c0_4 = arith.constant 0 : index
    %8 = vector.load %arg2[%c128, %c0_4] : memref<176x128xf32, #tpu.memory_space<vmem>>, vector<32x32xf32>
    %9 = arith.addf %7, %8 : vector<32x32xf32>
    %cst_5 = arith.constant dense<0xFF800000> : vector<32xf32>
    %10 = vector.multi_reduction <maximumf>, %9, %cst_5 [1] : vector<32x32xf32> to vector<32xf32>
    %11 = vector.shape_cast %10 : vector<32xf32> to vector<32x1xf32>
    %12 = vector.broadcast %11 : vector<32x1xf32> to vector<32x32xf32>
    %13 = arith.subf %9, %12 : vector<32x32xf32>
    %14 = math.exp %13 : vector<32x32xf32>
    %cst_6 = arith.constant dense<0.000000e+00> : vector<32xf32>
    %15 = vector.multi_reduction <add>, %14, %cst_6 [1] : vector<32x32xf32> to vector<32xf32>
    %16 = vector.shape_cast %15 : vector<32xf32> to vector<32x1xf32>
    %17 = vector.broadcast %16 : vector<32x1xf32> to vector<32x32xf32>
    %18 = arith.divf %14, %17 : vector<32x32xf32>
    %cst_7 = arith.constant dense<0.000000e+00> : vector<32x32xf32>
    %19 = tpu.matmul %18, %6, %cst_7 {dimension_numbers = #tpu.dot_dimension_numbers<[1], [0], [0], [1], [0, 0, 1, 1], [], []>} : vector<32x32xf32>, vector<32x32xf32>, vector<32x32xf32> -> vector<32x32xf32>
    %20 = vector.extract_strided_slice %19 {offsets = [0, 0], sizes = [16, 32], strides = [1, 1]} : vector<32x32xf32> to vector<16x32xf32>
    %21 = vector.extract_strided_slice %19 {offsets = [16, 0], sizes = [16, 32], strides = [1, 1]} : vector<32x32xf32> to vector<16x32xf32>
    %22 = arith.addf %20, %21 : vector<16x32xf32>
    %c168 = arith.constant 168 : index
    %c0_8 = arith.constant 0 : index
    %23 = vector.load %arg2[%c168, %c0_8] : memref<176x128xf32, #tpu.memory_space<vmem>>, vector<1x32xf32>
    %c169 = arith.constant 169 : index
    %c0_9 = arith.constant 0 : index
    %24 = vector.load %arg2[%c169, %c0_9] : memref<176x128xf32, #tpu.memory_space<vmem>>, vector<1x32xf32>
    %25 = arith.addf %3, %22 : vector<16x32xf32>
    %cst_10 = arith.constant dense<0.000000e+00> : vector<16xf32>
    %26 = vector.multi_reduction <add>, %25, %cst_10 [1] : vector<16x32xf32> to vector<16xf32>
    %27 = vector.shape_cast %26 : vector<16xf32> to vector<16x1xf32>
    %cst_11 = arith.constant 3.200000e+01 : f32
    %28 = vector.broadcast %cst_11 : f32 to vector<16x1xf32>
    %29 = arith.divf %27, %28 : vector<16x1xf32>
    %30 = vector.broadcast %29 : vector<16x1xf32> to vector<16x32xf32>
    %31 = arith.subf %25, %30 : vector<16x32xf32>
    %32 = arith.mulf %31, %31 : vector<16x32xf32>
    %cst_12 = arith.constant dense<0.000000e+00> : vector<16xf32>
    %33 = vector.multi_reduction <add>, %32, %cst_12 [1] : vector<16x32xf32> to vector<16xf32>
    %34 = vector.shape_cast %33 : vector<16xf32> to vector<16x1xf32>
    %cst_13 = arith.constant 3.200000e+01 : f32
    %35 = vector.broadcast %cst_13 : f32 to vector<16x1xf32>
    %36 = arith.divf %34, %35 : vector<16x1xf32>
    %37 = vector.broadcast %29 : vector<16x1xf32> to vector<16x32xf32>
    %38 = arith.subf %25, %37 : vector<16x32xf32>
    %cst_14 = arith.constant 9.99999974E-6 : f32
    %39 = vector.broadcast %cst_14 : f32 to vector<16x1xf32>
    %40 = arith.addf %36, %39 : vector<16x1xf32>
    %41 = math.rsqrt %40 : vector<16x1xf32>
    %42 = vector.broadcast %41 : vector<16x1xf32> to vector<16x32xf32>
    %43 = arith.mulf %38, %42 : vector<16x32xf32>
    %44 = vector.broadcast %23 : vector<1x32xf32> to vector<16x32xf32>
    %45 = arith.mulf %43, %44 : vector<16x32xf32>
    %46 = vector.broadcast %24 : vector<1x32xf32> to vector<16x32xf32>
    %47 = arith.addf %45, %46 : vector<16x32xf32>
    %c0_15 = arith.constant 0 : index
    %c0_16 = arith.constant 0 : index
    %48 = vector.load %arg2[%c0_15, %c0_16] : memref<176x128xf32, #tpu.memory_space<vmem>>, vector<32x64xf32>
    %c170 = arith.constant 170 : index
    %c0_17 = arith.constant 0 : index
    %49 = vector.load %arg2[%c170, %c0_17] : memref<176x128xf32, #tpu.memory_space<vmem>>, vector<1x64xf32>
    %c32 = arith.constant 32 : index
    %c0_18 = arith.constant 0 : index
    %50 = vector.load %arg2[%c32, %c0_18] : memref<176x128xf32, #tpu.memory_space<vmem>>, vector<64x32xf32>
    %c171 = arith.constant 171 : index
    %c0_19 = arith.constant 0 : index
    %51 = vector.load %arg2[%c171, %c0_19] : memref<176x128xf32, #tpu.memory_space<vmem>>, vector<1x32xf32>
    %cst_20 = arith.constant dense<0.000000e+00> : vector<16x64xf32>
    %52 = tpu.matmul %47, %48, %cst_20 {dimension_numbers = #tpu.dot_dimension_numbers<[1], [0], [0], [1], [0, 0, 1, 1], [], []>} : vector<16x32xf32>, vector<32x64xf32>, vector<16x64xf32> -> vector<16x64xf32>
    %53 = vector.broadcast %49 : vector<1x64xf32> to vector<16x64xf32>
    %54 = arith.addf %52, %53 : vector<16x64xf32>
    %cst_21 = arith.constant 0.000000e+00 : f32
    %55 = vector.broadcast %cst_21 : f32 to vector<16x64xf32>
    %56 = arith.maximumf %54, %55 : vector<16x64xf32>
    %cst_22 = arith.constant dense<0.000000e+00> : vector<16x32xf32>
    %57 = tpu.matmul %56, %50, %cst_22 {dimension_numbers = #tpu.dot_dimension_numbers<[1], [0], [0], [1], [0, 0, 1, 1], [], []>} : vector<16x64xf32>, vector<64x32xf32>, vector<16x32xf32> -> vector<16x32xf32>
    %58 = vector.broadcast %51 : vector<1x32xf32> to vector<16x32xf32>
    %59 = arith.addf %57, %58 : vector<16x32xf32>
    %c172 = arith.constant 172 : index
    %c0_23 = arith.constant 0 : index
    %60 = vector.load %arg2[%c172, %c0_23] : memref<176x128xf32, #tpu.memory_space<vmem>>, vector<1x32xf32>
    %c173 = arith.constant 173 : index
    %c0_24 = arith.constant 0 : index
    %61 = vector.load %arg2[%c173, %c0_24] : memref<176x128xf32, #tpu.memory_space<vmem>>, vector<1x32xf32>
    %62 = arith.addf %47, %59 : vector<16x32xf32>
    %cst_25 = arith.constant dense<0.000000e+00> : vector<16xf32>
    %63 = vector.multi_reduction <add>, %62, %cst_25 [1] : vector<16x32xf32> to vector<16xf32>
    %64 = vector.shape_cast %63 : vector<16xf32> to vector<16x1xf32>
    %cst_26 = arith.constant 3.200000e+01 : f32
    %65 = vector.broadcast %cst_26 : f32 to vector<16x1xf32>
    %66 = arith.divf %64, %65 : vector<16x1xf32>
    %67 = vector.broadcast %66 : vector<16x1xf32> to vector<16x32xf32>
    %68 = arith.subf %62, %67 : vector<16x32xf32>
    %69 = arith.mulf %68, %68 : vector<16x32xf32>
    %cst_27 = arith.constant dense<0.000000e+00> : vector<16xf32>
    %70 = vector.multi_reduction <add>, %69, %cst_27 [1] : vector<16x32xf32> to vector<16xf32>
    %71 = vector.shape_cast %70 : vector<16xf32> to vector<16x1xf32>
    %cst_28 = arith.constant 3.200000e+01 : f32
    %72 = vector.broadcast %cst_28 : f32 to vector<16x1xf32>
    %73 = arith.divf %71, %72 : vector<16x1xf32>
    %74 = vector.broadcast %66 : vector<16x1xf32> to vector<16x32xf32>
    %75 = arith.subf %62, %74 : vector<16x32xf32>
    %cst_29 = arith.constant 9.99999974E-6 : f32
    %76 = vector.broadcast %cst_29 : f32 to vector<16x1xf32>
    %77 = arith.addf %73, %76 : vector<16x1xf32>
    %78 = math.rsqrt %77 : vector<16x1xf32>
    %79 = vector.broadcast %78 : vector<16x1xf32> to vector<16x32xf32>
    %80 = arith.mulf %75, %79 : vector<16x32xf32>
    %81 = vector.broadcast %60 : vector<1x32xf32> to vector<16x32xf32>
    %82 = arith.mulf %80, %81 : vector<16x32xf32>
    %83 = vector.broadcast %61 : vector<1x32xf32> to vector<16x32xf32>
    %84 = arith.addf %82, %83 : vector<16x32xf32>
    %c160 = arith.constant 160 : index
    %c0_30 = arith.constant 0 : index
    %85 = vector.load %arg2[%c160, %c0_30] : memref<176x128xf32, #tpu.memory_space<vmem>>, vector<8x16xf32>
    %cst_31 = arith.constant dense<0.000000e+00> : vector<8x32xf32>
    %86 = tpu.matmul %85, %84, %cst_31 {dimension_numbers = #tpu.dot_dimension_numbers<[1], [0], [0], [1], [0, 0, 1, 1], [], []>} : vector<8x16xf32>, vector<16x32xf32>, vector<8x32xf32> -> vector<8x32xf32>
    %c96 = arith.constant 96 : index
    %c0_32 = arith.constant 0 : index
    %87 = vector.load %arg2[%c96, %c0_32] : memref<176x128xf32, #tpu.memory_space<vmem>>, vector<32x128xf32>
    %c174 = arith.constant 174 : index
    %c0_33 = arith.constant 0 : index
    %88 = vector.load %arg2[%c174, %c0_33] : memref<176x128xf32, #tpu.memory_space<vmem>>, vector<1x128xf32>
    %cst_34 = arith.constant dense<0.000000e+00> : vector<8x128xf32>
    %89 = tpu.matmul %86, %87, %cst_34 {dimension_numbers = #tpu.dot_dimension_numbers<[1], [0], [0], [1], [0, 0, 1, 1], [], []>} : vector<8x32xf32>, vector<32x128xf32>, vector<8x128xf32> -> vector<8x128xf32>
    %90 = vector.broadcast %88 : vector<1x128xf32> to vector<8x128xf32>
    %91 = arith.addf %89, %90 : vector<8x128xf32>
    %c0_35 = arith.constant 0 : index
    %c0_36 = arith.constant 0 : index
    %92 = vector.load %arg3[%c0_35, %c0_36] : memref<8x128xf32, #tpu.memory_space<vmem>>, vector<8x128xf32>
    tpu.vector_store %arg3[%c0_35, %c0_36], %91 {strides = array<i32>} : memref<8x128xf32, #tpu.memory_space<vmem>>, vector<8x128xf32>,
    return
  }
}

</mosaic_0001>

<llo_original>
// kernel: model_forward.1
$region0: #{model_forward.1}
  #allocation0 [shape = 'u32[]', space=smem, size = 0x4, offset = 0x4, fixed_abs, tag = 'smem constant byte address 0x4 - core index']
  #allocation1 [shape = 'u32[144,128]{1,0:T(1,128)}', space=vmem, size = 0x12000, scoped, tag = 'internal scratch']
  %s0 = inlined_call_operand.vmem [shape: f32[32,88], index: 0, kind: input, shape index: {}]
  %s1 = inlined_call_operand.hbm [shape: f32[88,128], index: 1, kind: input, shape index: {}]
  %s2 = inlined_call_operand.vmem [shape: f32[176,128], index: 2, kind: input, shape index: {}]
  %s3 = inlined_call_operand.vmem [shape: f32[8,128], index: 3, kind: output, shape index: {}]
  %s4 = sld [smem:[#allocation0]]
  $region26: #{model_forward.1} parent=0
    _
  %s6 = ssub.s32 1, %s4
  %s7 = scalar_select 0, %s6, %s4
  $region1: #{model_forward.1} parent=0
    #allocation2 [shape = 'u8[45056]{0}', space=vmem, size = 0xb000, scoped, tag = 'input window, operand 1, single buffered']
    #allocation3 [shape = 's32[1]{0}', space=sflag, size = 0x4, scoped, tag = 'scoped memory for model_forward.1']
    %8 = vsyncpa [#allocation3], 0
    // Predicated region
    $region2: #{model_forward.1} parent=1 // pred_check
      _
    $region3: #{model_forward.1} parent=1 // pred_check_branch
      %10 = sbr.rel (0) target = $region5
    $region4: #{model_forward.1} parent=1 // pred_region
      _
    $region5: #{model_forward.1} parent=1 // pred_fallthru
      _
    // Predicated region
    $region6: #{model_forward.1} parent=1 // pred_check
      _
    $region7: #{model_forward.1} parent=1 // pred_check_branch
      %12 = sbr.rel (0) target = $region9
    $region8: #{model_forward.1} parent=1 // pred_region
      %s14 = ssub.s32 1408, 1408
      %15 = vsyncadd [#allocation3], %s14
      %s16 = sshll.u32 [#allocation2], 4
      %s17 = int_to_ptr.vmem [resolvable:$true] %s16
      %22 = dma.hbm_to_vmem [thread:$0]  %s1, 1408, %s17, [#allocation3], 128, 128, 8
    $region9: #{model_forward.1} parent=1 // pred_fallthru
      _
    // Predicated region
    $region10: #{model_forward.1} parent=1 // pred_check
      _
    $region11: #{model_forward.1} parent=1 // pred_check_branch
      %24 = sbr.rel (0) target = $region13
    $region12: #{model_forward.1} parent=1 // pred_region
      _
    $region13: #{model_forward.1} parent=1 // pred_fallthru
      _
    // Predicated region
    $region14: #{model_forward.1} parent=1 // pred_check
      _
    $region15: #{model_forward.1} parent=1 // pred_check_branch
      %26 = sbr.rel (0) target = $region17
    $region16: #{model_forward.1} parent=1 // pred_region
      %27 = dma.done [#allocation3], 1408
    $region17: #{model_forward.1} parent=1 // pred_fallthru
      _
    %v28 = vld [vmem:[%s0] sm:$0xff]
    %v29 = vld [vmem:[%s0 + $0x8] sm:$0xff]
    %v30 = vld [vmem:[%s0 + $0x10] sm:$0xff]
    %v31 = vld [vmem:[%s0 + $0x18] sm:$0xff]
    %v32 = vld [vmem:[#allocation2] sm:$0xff]
    %v33 = vld [vmem:[#allocation2 + $0x8] sm:$0xff]
    %v34 = vld [vmem:[#allocation2 + $0x10] sm:$0xff]
    %v35 = vld [vmem:[#allocation2 + $0x18] sm:$0xff]
    %v36 = vld [vmem:[#allocation2 + $0x20] sm:$0xff]
    %v37 = vld [vmem:[#allocation2 + $0x28] sm:$0xff]
    %v38 = vld [vmem:[#allocation2 + $0x30] sm:$0xff]
    %v39 = vld [vmem:[#allocation2 + $0x38] sm:$0xff]
    %v40 = vld [vmem:[#allocation2 + $0x40] sm:$0xff]
    %v41 = vld [vmem:[#allocation2 + $0x48] sm:$0xff]
    %v42 = vld [vmem:[#allocation2 + $0x50] sm:$0xff]
    %vm43 = vcmask 719872
    %v45 = vsel %vm43, %v28, 0
    %v48 = vsel %vm43, %v29, 0
    %v51 = vsel %vm43, %v30, 0
    %v54 = vsel %vm43, %v31, 0
    %56 = vmatprep.subr.mxu0 0.0
    %57 = vmatpush1.msra.mxu0 0.0
    %58 = vmatprep.subr.mxu0 0.0
    %59 = vmatpush1.msra.mxu0 0.0
    %60 = vmatprep.subr.mxu0 0.0
    %61 = vmatpush1.msra.mxu0 0.0
    %62 = vmatprep.subr.mxu0 0.0
    %63 = vmatpush1.msra.mxu0 0.0
    %64 = vmatprep.subr.mxu0 0.0
    %65 = vmatpush1.msra.mxu0 0.0
    %66 = vmatprep.subr.mxu0 0.0
    %67 = vmatpush1.msra.mxu0 %v42
    %68 = vmatprep.subr.mxu0 0.0
    %69 = vmatpush1.msra.mxu0 %v41
    %70 = vmatprep.subr.mxu0 0.0
    %71 = vmatpush1.msra.mxu0 %v40
    %72 = vmatprep.subr.mxu0 0.0
    %73 = vmatpush1.msra.mxu0 %v39
    %74 = vmatprep.subr.mxu0 0.0
    %75 = vmatpush1.msra.mxu0 %v38
    %76 = vmatprep.subr.mxu0 0.0
    %77 = vmatpush1.msra.mxu0 %v37
    %78 = vmatprep.subr.mxu0 0.0
    %79 = vmatpush1.msra.mxu0 %v36
    %80 = vmatprep.subr.mxu0 0.0
    %81 = vmatpush1.msra.mxu0 %v35
    %82 = vmatprep.subr.mxu0 0.0
    %83 = vmatpush1.msra.mxu0 %v34
    %84 = vmatprep.subr.mxu0 0.0
    %85 = vmatpush1.msra.mxu0 %v33
    %86 = vmatprep.subr.mxu0 0.0
    %87 = vmatpush1.msra.mxu0 %v32
    %88 = vmatprep.subr.mxu0 0.0
    %89 = vmatpush2.msra.mxu0 0.0
    %90 = vmatprep.subr.mxu0 0.0
    %91 = vmatpush2.msra.mxu0 0.0
    %92 = vmatprep.subr.mxu0 0.0
    %93 = vmatpush2.msra.mxu0 0.0
    %94 = vmatprep.subr.mxu0 0.0
    %95 = vmatpush2.msra.mxu0 0.0
    %96 = vmatprep.subr.mxu0 0.0
    %97 = vmatpush2.msra.mxu0 0.0
    %98 = vmatprep.subr.mxu0 0.0
    %99 = vmatpush2.msra.mxu0 0.0
    %100 = vmatprep.subr.mxu0 0.0
    %101 = vmatpush2.msra.mxu0 0.0
    %102 = vmatprep.subr.mxu0 0.0
    %103 = vmatpush2.msra.mxu0 0.0
    %104 = vmatprep.subr.mxu0 0.0
    %105 = vmatpush2.msra.mxu0 0.0
    %106 = vmatprep.subr.mxu0 0.0
    %107 = vmatpush2.msra.mxu0 0.0
    %108 = vmatprep.subr.mxu0 0.0
    %109 = vmatpush2.msra.mxu0 0.0
    %110 = vmatprep.subr.mxu0 0.0
    %111 = vmatpush2.msra.mxu0 0.0
    %112 = vmatprep.subr.mxu0 0.0
    %113 = vmatpush2.msra.mxu0 0.0
    %114 = vmatprep.subr.mxu0 0.0
    %115 = vmatpush2.msra.mxu0 0.0
    %116 = vmatprep.subr.mxu0 0.0
    %117 = vmatpush2.msra.mxu0 0.0
    %118 = vmatprep.subr.mxu0 0.0
    %119 = vmatpush2.msra.mxu0 0.0
    %120 = vmatprep.mubr.f32.mxu0 0.0
    %121 = vmatmul.mubr.f32.gmra.mxu0 %v45
    %v122 = vpop.f32.mrf.mxu0
    %v123 = vadd.f32 0.0, %v122
    %v124 = vpop.f32.mrf.mxu0
    %125 = vmatprep.mubr.f32.mxu0 0.0
    %126 = vmatmul.mubr.f32.gmra.mxu0 %v48
    %v127 = vpop.f32.mrf.mxu0
    %v128 = vadd.f32 0.0, %v127
    %v129 = vpop.f32.mrf.mxu0
    %130 = vmatprep.mubr.f32.mxu0 0.0
    %131 = vmatmul.mubr.f32.gmra.mxu0 %v51
    %v132 = vpop.f32.mrf.mxu0
    %v133 = vadd.f32 0.0, %v132
    %v134 = vpop.f32.mrf.mxu0
    %135 = vmatprep.mubr.f32.mxu0 0.0
    %136 = vmatmul.mubr.f32.gmra.mxu0 %v54
    %v137 = vpop.f32.mrf.mxu0
    %v138 = vadd.f32 0.0, %v137
    %v139 = vpop.f32.mrf.mxu0
    %140 = vdwg.mxu0
    %v141 = vld [vmem:[%s2 + $0x80] sm:$0xff]
    %v142 = vld [vmem:[%s2 + $0x88] sm:$0xff]
    %v143 = vld [vmem:[%s2 + $0x90] sm:$0xff]
    %v144 = vld [vmem:[%s2 + $0x98] sm:$0xff]
    %149 = vrot.lane.b32.xlu0 %v123, 96
    %v150 = vpop.permute.xlu0 %149
    %151 = vrot.lane.b32.xlu0 %v128, 96
    %v152 = vpop.permute.xlu0 %151
    %153 = vrot.lane.b32.xlu0 %v133, 96
    %v154 = vpop.permute.xlu0 %153
    %155 = vrot.lane.b32.xlu0 %v138, 96
    %v156 = vpop.permute.xlu0 %155
    %157 = vrot.lane.b32.xlu0 %v123, 80
    %v158 = vpop.permute.xlu0 %157
    %159 = vrot.lane.b32.xlu0 %v128, 80
    %v160 = vpop.permute.xlu0 %159
    %161 = vrot.lane.b32.xlu0 %v133, 80
    %v162 = vpop.permute.xlu0 %161
    %163 = vrot.lane.b32.xlu0 %v138, 80
    %v164 = vpop.permute.xlu0 %163
    %vm165 = vcmask 130048
    %v166 = vsel %vm165, %v150, 0
    %v168 = vsel %vm165, %v152, 0
    %v170 = vsel %vm165, %v154, 0
    %v172 = vsel %vm165, %v156, 0
    %v174 = vsel %vm165, %v158, 0
    %v176 = vsel %vm165, %v160, 0
    %v178 = vsel %vm165, %v162, 0
    %v180 = vsel %vm165, %v164, 0
    %182 = vmatprep.subr.mxu0 0.0
    %183 = vmatpush1.xpose.msra.mxu0 0.0
    %184 = vmatprep.subr.mxu0 0.0
    %185 = vmatpush1.xpose.msra.mxu0 0.0
    %186 = vmatprep.subr.mxu0 0.0
    %187 = vmatpush1.xpose.msra.mxu0 0.0
    %188 = vmatprep.subr.mxu0 0.0
    %189 = vmatpush1.xpose.msra.mxu0 0.0
    %190 = vmatprep.subr.mxu0 0.0
    %191 = vmatpush1.xpose.msra.mxu0 0.0
    %192 = vmatprep.subr.mxu0 0.0
    %193 = vmatpush1.xpose.msra.mxu0 0.0
    %194 = vmatprep.subr.mxu0 0.0
    %195 = vmatpush1.xpose.msra.mxu0 0.0
    %196 = vmatprep.subr.mxu0 0.0
    %197 = vmatpush1.xpose.msra.mxu0 0.0
    %198 = vmatprep.subr.mxu0 0.0
    %199 = vmatpush1.xpose.msra.mxu0 0.0
    %200 = vmatprep.subr.mxu0 0.0
    %201 = vmatpush1.xpose.msra.mxu0 0.0
    %202 = vmatprep.subr.mxu0 0.0
    %203 = vmatpush1.xpose.msra.mxu0 0.0
    %204 = vmatprep.subr.mxu0 0.0
    %205 = vmatpush1.xpose.msra.mxu0 0.0
    %206 = vmatprep.subr.mxu0 0.0
    %207 = vmatpush1.xpose.msra.mxu0 %v180
    %208 = vmatprep.subr.mxu0 0.0
    %209 = vmatpush1.xpose.msra.mxu0 %v178
    %210 = vmatprep.subr.mxu0 0.0
    %211 = vmatpush1.xpose.msra.mxu0 %v176
    %212 = vmatprep.subr.mxu0 0.0
    %213 = vmatpush1.xpose.msra.mxu0 %v174
    %214 = vmatprep.subr.mxu0 0.0
    %215 = vmatpush2.xpose.msra.mxu0 0.0
    %216 = vmatprep.subr.mxu0 0.0
    %217 = vmatpush2.xpose.msra.mxu0 0.0
    %218 = vmatprep.subr.mxu0 0.0
    %219 = vmatpush2.xpose.msra.mxu0 0.0
    %220 = vmatprep.subr.mxu0 0.0
    %221 = vmatpush2.xpose.msra.mxu0 0.0
    %222 = vmatprep.subr.mxu0 0.0
    %223 = vmatpush2.xpose.msra.mxu0 0.0
    %224 = vmatprep.subr.mxu0 0.0
    %225 = vmatpush2.xpose.msra.mxu0 0.0
    %226 = vmatprep.subr.mxu0 0.0
    %227 = vmatpush2.xpose.msra.mxu0 0.0
    %228 = vmatprep.subr.mxu0 0.0
    %229 = vmatpush2.xpose.msra.mxu0 0.0
    %230 = vmatprep.subr.mxu0 0.0
    %231 = vmatpush2.xpose.msra.mxu0 0.0
    %232 = vmatprep.subr.mxu0 0.0
    %233 = vmatpush2.xpose.msra.mxu0 0.0
    %234 = vmatprep.subr.mxu0 0.0
    %235 = vmatpush2.xpose.msra.mxu0 0.0
    %236 = vmatprep.subr.mxu0 0.0
    %237 = vmatpush2.xpose.msra.mxu0 0.0
    %238 = vmatprep.subr.mxu0 0.0
    %239 = vmatpush2.xpose.msra.mxu0 0.0
    %240 = vmatprep.subr.mxu0 0.0
    %241 = vmatpush2.xpose.msra.mxu0 0.0
    %242 = vmatprep.subr.mxu0 0.0
    %243 = vmatpush2.xpose.msra.mxu0 0.0
    %244 = vmatprep.subr.mxu0 0.0
    %245 = vmatpush2.xpose.msra.mxu0 0.0
    %246 = vmatprep.mubr.f32.mxu0 0.0
    %247 = vmatmul.mubr.f32.gmra.mxu0 %v166
    %v248 = vpop.f32.mrf.mxu0
    %v249 = vadd.f32 %v141, %v248
    %v250 = vpop.f32.mrf.mxu0
    %251 = vmatprep.mubr.f32.mxu0 0.0
    %252 = vmatmul.mubr.f32.gmra.mxu0 %v168
    %v253 = vpop.f32.mrf.mxu0
    %v254 = vadd.f32 %v142, %v253
    %v255 = vpop.f32.mrf.mxu0
    %256 = vmatprep.mubr.f32.mxu0 0.0
    %257 = vmatmul.mubr.f32.gmra.mxu0 %v170
    %v258 = vpop.f32.mrf.mxu0
    %v259 = vadd.f32 %v143, %v258
    %v260 = vpop.f32.mrf.mxu0
    %261 = vmatprep.mubr.f32.mxu0 0.0
    %262 = vmatmul.mubr.f32.gmra.mxu0 %v172
    %v263 = vpop.f32.mrf.mxu0
    %v264 = vadd.f32 %v144, %v263
    %v265 = vpop.f32.mrf.mxu0
    %266 = vdwg.mxu0
    %vm267 = vcmask 261120
    %v268 = vsel %vm267, %v249, -inf
    %269 = vmax.xlane.f32.xlu0 %v268
    %v270 = vpop.xlane.xlu0 %269
    %v271 = vsel %vm267, %v254, -inf
    %272 = vmax.xlane.f32.xlu0 %v271
    %v273 = vpop.xlane.xlu0 %272
    %v274 = vsel %vm267, %v259, -inf
    %275 = vmax.xlane.f32.xlu0 %v274
    %v276 = vpop.xlane.xlu0 %275
    %v277 = vsel %vm267, %v264, -inf
    %278 = vmax.xlane.f32.xlu0 %v277
    %v279 = vpop.xlane.xlu0 %278
    %v280 = vsub.f32 %v249, %v270
    %v281 = vsub.f32 %v254, %v273
    %v282 = vsub.f32 %v259, %v276
    %v283 = vsub.f32 %v264, %v279
    %v284 = vmul.f32 %v280, 1.442695
    %v285 = vpow.pop %v284
    %v286 = vmul.f32 %v281, 1.442695
    %v287 = vpow.pop %v286
    %v288 = vmul.f32 %v282, 1.442695
    %v289 = vpow.pop %v288
    %v290 = vmul.f32 %v283, 1.442695
    %v291 = vpow.pop %v290
    %v292 = vsel %vm267, %v285, 0.0
    %293 = vadd.xlane.f32.xlu0 %v292
    %v294 = vpop.xlane.xlu0 %293
    %v295 = vsel %vm267, %v287, 0.0
    %296 = vadd.xlane.f32.xlu0 %v295
    %v297 = vpop.xlane.xlu0 %296
    %v298 = vsel %vm267, %v289, 0.0
    %299 = vadd.xlane.f32.xlu0 %v298
    %v300 = vpop.xlane.xlu0 %299
    %v301 = vsel %vm267, %v291, 0.0
    %302 = vadd.xlane.f32.xlu0 %v301
    %v303 = vpop.xlane.xlu0 %302
    %v304 = vrcp.pop %v294
    %v305 = vmul.f32 %v285, %v304
    %v306 = vrcp.pop %v297
    %v307 = vmul.f32 %v287, %v306
    %v308 = vrcp.pop %v300
    %v309 = vmul.f32 %v289, %v308
    %v310 = vrcp.pop %v303
    %v311 = vmul.f32 %v291, %v310
    %312 = vrot.lane.b32.xlu0 %v123, 64
    %v313 = vpop.permute.xlu0 %312
    %314 = vrot.lane.b32.xlu0 %v128, 64
    %v315 = vpop.permute.xlu0 %314
    %316 = vrot.lane.b32.xlu0 %v133, 64
    %v317 = vpop.permute.xlu0 %316
    %318 = vrot.lane.b32.xlu0 %v138, 64
    %v319 = vpop.permute.xlu0 %318
    %v325 = vsel %vm267, %v305, 0
    %v328 = vsel %vm267, %v307, 0
    %v331 = vsel %vm267, %v309, 0
    %v334 = vsel %vm267, %v311, 0
    %336 = vmatprep.subr.mxu0 0.0
    %337 = vmatpush1.msra.mxu0 0.0
    %338 = vmatprep.subr.mxu0 0.0
    %339 = vmatpush1.msra.mxu0 0.0
    %340 = vmatprep.subr.mxu0 0.0
    %341 = vmatpush1.msra.mxu0 0.0
    %342 = vmatprep.subr.mxu0 0.0
    %343 = vmatpush1.msra.mxu0 0.0
    %344 = vmatprep.subr.mxu0 0.0
    %345 = vmatpush1.msra.mxu0 0.0
    %346 = vmatprep.subr.mxu0 0.0
    %347 = vmatpush1.msra.mxu0 0.0
    %348 = vmatprep.subr.mxu0 0.0
    %349 = vmatpush1.msra.mxu0 0.0
    %350 = vmatprep.subr.mxu0 0.0
    %351 = vmatpush1.msra.mxu0 0.0
    %352 = vmatprep.subr.mxu0 0.0
    %353 = vmatpush1.msra.mxu0 0.0
    %354 = vmatprep.subr.mxu0 0.0
    %355 = vmatpush1.msra.mxu0 0.0
    %356 = vmatprep.subr.mxu0 0.0
    %357 = vmatpush1.msra.mxu0 0.0
    %358 = vmatprep.subr.mxu0 0.0
    %359 = vmatpush1.msra.mxu0 0.0
    %360 = vmatprep.subr.mxu0 0.0
    %361 = vmatpush1.msra.mxu0 %v319
    %362 = vmatprep.subr.mxu0 0.0
    %363 = vmatpush1.msra.mxu0 %v317
    %364 = vmatprep.subr.mxu0 0.0
    %365 = vmatpush1.msra.mxu0 %v315
    %366 = vmatprep.subr.mxu0 0.0
    %367 = vmatpush1.msra.mxu0 %v313
    %368 = vmatprep.subr.mxu0 0.0
    %369 = vmatpush2.msra.mxu0 0.0
    %370 = vmatprep.subr.mxu0 0.0
    %371 = vmatpush2.msra.mxu0 0.0
    %372 = vmatprep.subr.mxu0 0.0
    %373 = vmatpush2.msra.mxu0 0.0
    %374 = vmatprep.subr.mxu0 0.0
    %375 = vmatpush2.msra.mxu0 0.0
    %376 = vmatprep.subr.mxu0 0.0
    %377 = vmatpush2.msra.mxu0 0.0
    %378 = vmatprep.subr.mxu0 0.0
    %379 = vmatpush2.msra.mxu0 0.0
    %380 = vmatprep.subr.mxu0 0.0
    %381 = vmatpush2.msra.mxu0 0.0
    %382 = vmatprep.subr.mxu0 0.0
    %383 = vmatpush2.msra.mxu0 0.0
    %384 = vmatprep.subr.mxu0 0.0
    %385 = vmatpush2.msra.mxu0 0.0
    %386 = vmatprep.subr.mxu0 0.0
    %387 = vmatpush2.msra.mxu0 0.0
    %388 = vmatprep.subr.mxu0 0.0
    %389 = vmatpush2.msra.mxu0 0.0
    %390 = vmatprep.subr.mxu0 0.0
    %391 = vmatpush2.msra.mxu0 0.0
    %392 = vmatprep.subr.mxu0 0.0
    %393 = vmatpush2.msra.mxu0 0.0
    %394 = vmatprep.subr.mxu0 0.0
    %395 = vmatpush2.msra.mxu0 0.0
    %396 = vmatprep.subr.mxu0 0.0
    %397 = vmatpush2.msra.mxu0 0.0
    %398 = vmatprep.subr.mxu0 0.0
    %399 = vmatpush2.msra.mxu0 0.0
    %400 = vmatprep.mubr.f32.mxu0 0.0
    %401 = vmatmul.mubr.f32.gmra.mxu0 %v325
    %v402 = vpop.f32.mrf.mxu0
    %v403 = vadd.f32 0.0, %v402
    %v404 = vpop.f32.mrf.mxu0
    %405 = vmatprep.mubr.f32.mxu0 0.0
    %406 = vmatmul.mubr.f32.gmra.mxu0 %v328
    %v407 = vpop.f32.mrf.mxu0
    %v408 = vadd.f32 0.0, %v407
    %v409 = vpop.f32.mrf.mxu0
    %410 = vmatprep.mubr.f32.mxu0 0.0
    %411 = vmatmul.mubr.f32.gmra.mxu0 %v331
    %v412 = vpop.f32.mrf.mxu0
    %v413 = vadd.f32 0.0, %v412
    %v414 = vpop.f32.mrf.mxu0
    %415 = vmatprep.mubr.f32.mxu0 0.0
    %416 = vmatmul.mubr.f32.gmra.mxu0 %v334
    %v417 = vpop.f32.mrf.mxu0
    %v418 = vadd.f32 0.0, %v417
    %v419 = vpop.f32.mrf.mxu0
    %420 = vdwg.mxu0
    %v421 = vadd.f32 %v403, %v413
    %v422 = vadd.f32 %v408, %v418
    %v423 = vld [vmem:[%s2 + $0xa8] sm:$0x1]
    %v424 = vld [vmem:[%s2 + $0xa9] sm:$0x1]
    %v425 = vadd.f32 %v123, %v421
    %v426 = vadd.f32 %v128, %v422
    %v427 = vsel %vm267, %v425, 0.0
    %428 = vadd.xlane.f32.xlu0 %v427
    %v429 = vpop.xlane.xlu0 %428
    %v430 = vsel %vm267, %v426, 0.0
    %431 = vadd.xlane.f32.xlu0 %v430
    %v432 = vpop.xlane.xlu0 %431
    %v433 = vrcp.pop 32.0
    %v434 = vmul.f32 %v429, %v433
    %v435 = vmul.f32 %v432, %v433
    %v436 = vsub.f32 %v425, %v434
    %v437 = vsub.f32 %v426, %v435
    %v438 = vmul.f32 %v436, %v436
    %v439 = vmul.f32 %v437, %v437
    %v440 = vsel %vm267, %v438, 0.0
    %441 = vadd.xlane.f32.xlu0 %v440
    %v442 = vpop.xlane.xlu0 %441
    %v443 = vsel %vm267, %v439, 0.0
    %444 = vadd.xlane.f32.xlu0 %v443
    %v445 = vpop.xlane.xlu0 %444
    %v446 = vmul.f32 %v442, %v433
    %v447 = vmul.f32 %v445, %v433
    %v448 = vadd.f32 %v446, 1e-05
    %v449 = vadd.f32 %v447, 1e-05
    %v450 = vrsqrt.pop %v448
    %v451 = vrsqrt.pop %v449
    %v452 = vmul.f32 %v436, %v450
    %v453 = vmul.f32 %v437, %v451
    %v454 = vlaneseq
    %v455 = vshrl.u32 %v454, 7
    %v456 = vsub.s32 0, %v455
    %v457 = vrot.slane %v423, %v456
    %v458 = vmul.f32 %v452, %v457
    %v459 = vmul.f32 %v453, %v457
    %v460 = vlaneseq
    %v461 = vshrl.u32 %v460, 7
    %v462 = vsub.s32 0, %v461
    %v463 = vrot.slane %v424, %v462
    %v464 = vadd.f32 %v458, %v463
    %v465 = vadd.f32 %v459, %v463
    %v466 = vld [vmem:[%s2] sm:$0xff]
    %v467 = vld [vmem:[%s2 + $0x8] sm:$0xff]
    %v468 = vld [vmem:[%s2 + $0x10] sm:$0xff]
    %v469 = vld [vmem:[%s2 + $0x18] sm:$0xff]
    %v470 = vld [vmem:[%s2 + $0xaa] sm:$0x1]
    %v471 = vld [vmem:[%s2 + $0x20] sm:$0xff]
    %v472 = vld [vmem:[%s2 + $0x28] sm:$0xff]
    %v473 = vld [vmem:[%s2 + $0x30] sm:$0xff]
    %v474 = vld [vmem:[%s2 + $0x38] sm:$0xff]
    %v475 = vld [vmem:[%s2 + $0x40] sm:$0xff]
    %v476 = vld [vmem:[%s2 + $0x48] sm:$0xff]
    %v477 = vld [vmem:[%s2 + $0x50] sm:$0xff]
    %v478 = vld [vmem:[%s2 + $0x58] sm:$0xff]
    %v479 = vld [vmem:[%s2 + $0xab] sm:$0x1]
    %v480 = vlaneseq
    %v481 = vshrl.u32 %v480, 7
    %v482 = vsub.s32 0, %v481
    %v483 = vrot.slane %v470, %v482
    %v485 = vsel %vm267, %v464, 0
    %v488 = vsel %vm267, %v465, 0
    %490 = vmatprep.subr.mxu0 0.0
    %491 = vmatpush1.msra.mxu0 0.0
    %492 = vmatprep.subr.mxu0 0.0
    %493 = vmatpush1.msra.mxu0 0.0
    %494 = vmatprep.subr.mxu0 0.0
    %495 = vmatpush1.msra.mxu0 0.0
    %496 = vmatprep.subr.mxu0 0.0
    %497 = vmatpush1.msra.mxu0 0.0
    %498 = vmatprep.subr.mxu0 0.0
    %499 = vmatpush1.msra.mxu0 0.0
    %500 = vmatprep.subr.mxu0 0.0
    %501 = vmatpush1.msra.mxu0 0.0
    %502 = vmatprep.subr.mxu0 0.0
    %503 = vmatpush1.msra.mxu0 0.0
    %504 = vmatprep.subr.mxu0 0.0
    %505 = vmatpush1.msra.mxu0 0.0
    %506 = vmatprep.subr.mxu0 0.0
    %507 = vmatpush1.msra.mxu0 0.0
    %508 = vmatprep.subr.mxu0 0.0
    %509 = vmatpush1.msra.mxu0 0.0
    %510 = vmatprep.subr.mxu0 0.0
    %511 = vmatpush1.msra.mxu0 0.0
    %512 = vmatprep.subr.mxu0 0.0
    %513 = vmatpush1.msra.mxu0 0.0
    %514 = vmatprep.subr.mxu0 0.0
    %515 = vmatpush1.msra.mxu0 %v469
    %516 = vmatprep.subr.mxu0 0.0
    %517 = vmatpush1.msra.mxu0 %v468
    %518 = vmatprep.subr.mxu0 0.0
    %519 = vmatpush1.msra.mxu0 %v467
    %520 = vmatprep.subr.mxu0 0.0
    %521 = vmatpush1.msra.mxu0 %v466
    %522 = vmatprep.subr.mxu0 0.0
    %523 = vmatpush2.msra.mxu0 0.0
    %524 = vmatprep.subr.mxu0 0.0
    %525 = vmatpush2.msra.mxu0 0.0
    %526 = vmatprep.subr.mxu0 0.0
    %527 = vmatpush2.msra.mxu0 0.0
    %528 = vmatprep.subr.mxu0 0.0
    %529 = vmatpush2.msra.mxu0 0.0
    %530 = vmatprep.subr.mxu0 0.0
    %531 = vmatpush2.msra.mxu0 0.0
    %532 = vmatprep.subr.mxu0 0.0
    %533 = vmatpush2.msra.mxu0 0.0
    %534 = vmatprep.subr.mxu0 0.0
    %535 = vmatpush2.msra.mxu0 0.0
    %536 = vmatprep.subr.mxu0 0.0
    %537 = vmatpush2.msra.mxu0 0.0
    %538 = vmatprep.subr.mxu0 0.0
    %539 = vmatpush2.msra.mxu0 0.0
    %540 = vmatprep.subr.mxu0 0.0
    %541 = vmatpush2.msra.mxu0 0.0
    %542 = vmatprep.subr.mxu0 0.0
    %543 = vmatpush2.msra.mxu0 0.0
    %544 = vmatprep.subr.mxu0 0.0
    %545 = vmatpush2.msra.mxu0 0.0
    %546 = vmatprep.subr.mxu0 0.0
    %547 = vmatpush2.msra.mxu0 0.0
    %548 = vmatprep.subr.mxu0 0.0
    %549 = vmatpush2.msra.mxu0 0.0
    %550 = vmatprep.subr.mxu0 0.0
    %551 = vmatpush2.msra.mxu0 0.0
    %552 = vmatprep.subr.mxu0 0.0
    %553 = vmatpush2.msra.mxu0 0.0
    %554 = vmatprep.mubr.f32.mxu0 0.0
    %555 = vmatmul.mubr.f32.gmra.mxu0 %v485
    %v556 = vpop.f32.mrf.mxu0
    %v557 = vadd.f32 %v483, %v556
    %v558 = vpop.f32.mrf.mxu0
    %559 = vmatprep.mubr.f32.mxu0 0.0
    %560 = vmatmul.mubr.f32.gmra.mxu0 %v488
    %v561 = vpop.f32.mrf.mxu0
    %v562 = vadd.f32 %v483, %v561
    %v563 = vpop.f32.mrf.mxu0
    %564 = vdwg.mxu0
    %v565 = vmax.f32 %v557, 0.0
    %v566 = vmax.f32 %v562, 0.0
    %v567 = vlaneseq
    %v568 = vshrl.u32 %v567, 7
    %v569 = vsub.s32 0, %v568
    %v570 = vrot.slane %v479, %v569
    %vm571 = vcmask 523264
    %v573 = vsel %vm571, %v565, 0
    %v576 = vsel %vm571, %v566, 0
    %578 = vmatprep.subr.mxu0 0.0
    %579 = vmatpush1.msra.mxu0 0.0
    %580 = vmatprep.subr.mxu0 0.0
    %581 = vmatpush1.msra.mxu0 0.0
    %582 = vmatprep.subr.mxu0 0.0
    %583 = vmatpush1.msra.mxu0 0.0
    %584 = vmatprep.subr.mxu0 0.0
    %585 = vmatpush1.msra.mxu0 0.0
    %586 = vmatprep.subr.mxu0 0.0
    %587 = vmatpush1.msra.mxu0 0.0
    %588 = vmatprep.subr.mxu0 0.0
    %589 = vmatpush1.msra.mxu0 0.0
    %590 = vmatprep.subr.mxu0 0.0
    %591 = vmatpush1.msra.mxu0 0.0
    %592 = vmatprep.subr.mxu0 0.0
    %593 = vmatpush1.msra.mxu0 0.0
    %594 = vmatprep.subr.mxu0 0.0
    %595 = vmatpush1.msra.mxu0 %v478
    %596 = vmatprep.subr.mxu0 0.0
    %597 = vmatpush1.msra.mxu0 %v477
    %598 = vmatprep.subr.mxu0 0.0
    %599 = vmatpush1.msra.mxu0 %v476
    %600 = vmatprep.subr.mxu0 0.0
    %601 = vmatpush1.msra.mxu0 %v475
    %602 = vmatprep.subr.mxu0 0.0
    %603 = vmatpush1.msra.mxu0 %v474
    %604 = vmatprep.subr.mxu0 0.0
    %605 = vmatpush1.msra.mxu0 %v473
    %606 = vmatprep.subr.mxu0 0.0
    %607 = vmatpush1.msra.mxu0 %v472
    %608 = vmatprep.subr.mxu0 0.0
    %609 = vmatpush1.msra.mxu0 %v471
    %610 = vmatprep.subr.mxu0 0.0
    %611 = vmatpush2.msra.mxu0 0.0
    %612 = vmatprep.subr.mxu0 0.0
    %613 = vmatpush2.msra.mxu0 0.0
    %614 = vmatprep.subr.mxu0 0.0
    %615 = vmatpush2.msra.mxu0 0.0
    %616 = vmatprep.subr.mxu0 0.0
    %617 = vmatpush2.msra.mxu0 0.0
    %618 = vmatprep.subr.mxu0 0.0
    %619 = vmatpush2.msra.mxu0 0.0
    %620 = vmatprep.subr.mxu0 0.0
    %621 = vmatpush2.msra.mxu0 0.0
    %622 = vmatprep.subr.mxu0 0.0
    %623 = vmatpush2.msra.mxu0 0.0
    %624 = vmatprep.subr.mxu0 0.0
    %625 = vmatpush2.msra.mxu0 0.0
    %626 = vmatprep.subr.mxu0 0.0
    %627 = vmatpush2.msra.mxu0 0.0
    %628 = vmatprep.subr.mxu0 0.0
    %629 = vmatpush2.msra.mxu0 0.0
    %630 = vmatprep.subr.mxu0 0.0
    %631 = vmatpush2.msra.mxu0 0.0
    %632 = vmatprep.subr.mxu0 0.0
    %633 = vmatpush2.msra.mxu0 0.0
    %634 = vmatprep.subr.mxu0 0.0
    %635 = vmatpush2.msra.mxu0 0.0
    %636 = vmatprep.subr.mxu0 0.0
    %637 = vmatpush2.msra.mxu0 0.0
    %638 = vmatprep.subr.mxu0 0.0
    %639 = vmatpush2.msra.mxu0 0.0
    %640 = vmatprep.subr.mxu0 0.0
    %641 = vmatpush2.msra.mxu0 0.0
    %642 = vmatprep.mubr.f32.mxu0 0.0
    %643 = vmatmul.mubr.f32.gmra.mxu0 %v573
    %v644 = vpop.f32.mrf.mxu0
    %v645 = vadd.f32 %v570, %v644
    %v646 = vpop.f32.mrf.mxu0
    %647 = vmatprep.mubr.f32.mxu0 0.0
    %648 = vmatmul.mubr.f32.gmra.mxu0 %v576
    %v649 = vpop.f32.mrf.mxu0
    %v650 = vadd.f32 %v570, %v649
    %v651 = vpop.f32.mrf.mxu0
    %652 = vdwg.mxu0
    %v653 = vld [vmem:[%s2 + $0xac] sm:$0x1]
    %v654 = vld [vmem:[%s2 + $0xad] sm:$0x1]
    %v655 = vadd.f32 %v464, %v645
    %v656 = vadd.f32 %v465, %v650
    %v657 = vsel %vm267, %v655, 0.0
    %658 = vadd.xlane.f32.xlu0 %v657
    %v659 = vpop.xlane.xlu0 %658
    %v660 = vsel %vm267, %v656, 0.0
    %661 = vadd.xlane.f32.xlu0 %v660
    %v662 = vpop.xlane.xlu0 %661
    %v663 = vmul.f32 %v659, %v433
    %v664 = vmul.f32 %v662, %v433
    %v665 = vsub.f32 %v655, %v663
    %v666 = vsub.f32 %v656, %v664
    %v667 = vmul.f32 %v665, %v665
    %v668 = vmul.f32 %v666, %v666
    %v669 = vsel %vm267, %v667, 0.0
    %670 = vadd.xlane.f32.xlu0 %v669
    %v671 = vpop.xlane.xlu0 %670
    %v672 = vsel %vm267, %v668, 0.0
    %673 = vadd.xlane.f32.xlu0 %v672
    %v674 = vpop.xlane.xlu0 %673
    %v675 = vmul.f32 %v671, %v433
    %v676 = vmul.f32 %v674, %v433
    %v677 = vadd.f32 %v675, 1e-05
    %v678 = vadd.f32 %v676, 1e-05
    %v679 = vrsqrt.pop %v677
    %v680 = vrsqrt.pop %v678
    %v681 = vmul.f32 %v665, %v679
    %v682 = vmul.f32 %v666, %v680
    %v683 = vlaneseq
    %v684 = vshrl.u32 %v683, 7
    %v685 = vsub.s32 0, %v684
    %v686 = vrot.slane %v653, %v685
    %v687 = vmul.f32 %v681, %v686
    %v688 = vmul.f32 %v682, %v686
    %v689 = vlaneseq
    %v690 = vshrl.u32 %v689, 7
    %v691 = vsub.s32 0, %v690
    %v692 = vrot.slane %v654, %v691
    %v693 = vadd.f32 %v687, %v692
    %v694 = vadd.f32 %v688, %v692
    %v695 = vld [vmem:[%s2 + $0xa0] sm:$0xff]
    %v697 = vsel %vm165, %v695, 0
    %699 = vmatprep.subr.mxu0 0.0
    %700 = vmatpush1.msra.mxu0 0.0
    %701 = vmatprep.subr.mxu0 0.0
    %702 = vmatpush1.msra.mxu0 0.0
    %703 = vmatprep.subr.mxu0 0.0
    %704 = vmatpush1.msra.mxu0 0.0
    %705 = vmatprep.subr.mxu0 0.0
    %706 = vmatpush1.msra.mxu0 0.0
    %707 = vmatprep.subr.mxu0 0.0
    %708 = vmatpush1.msra.mxu0 0.0
    %709 = vmatprep.subr.mxu0 0.0
    %710 = vmatpush1.msra.mxu0 0.0
    %711 = vmatprep.subr.mxu0 0.0
    %712 = vmatpush1.msra.mxu0 0.0
    %713 = vmatprep.subr.mxu0 0.0
    %714 = vmatpush1.msra.mxu0 0.0
    %715 = vmatprep.subr.mxu0 0.0
    %716 = vmatpush1.msra.mxu0 0.0
    %717 = vmatprep.subr.mxu0 0.0
    %718 = vmatpush1.msra.mxu0 0.0
    %719 = vmatprep.subr.mxu0 0.0
    %720 = vmatpush1.msra.mxu0 0.0
    %721 = vmatprep.subr.mxu0 0.0
    %722 = vmatpush1.msra.mxu0 0.0
    %723 = vmatprep.subr.mxu0 0.0
    %724 = vmatpush1.msra.mxu0 0.0
    %725 = vmatprep.subr.mxu0 0.0
    %726 = vmatpush1.msra.mxu0 0.0
    %727 = vmatprep.subr.mxu0 0.0
    %728 = vmatpush1.msra.mxu0 %v694
    %729 = vmatprep.subr.mxu0 0.0
    %730 = vmatpush1.msra.mxu0 %v693
    %731 = vmatprep.subr.mxu0 0.0
    %732 = vmatpush2.msra.mxu0 0.0
    %733 = vmatprep.subr.mxu0 0.0
    %734 = vmatpush2.msra.mxu0 0.0
    %735 = vmatprep.subr.mxu0 0.0
    %736 = vmatpush2.msra.mxu0 0.0
    %737 = vmatprep.subr.mxu0 0.0
    %738 = vmatpush2.msra.mxu0 0.0
    %739 = vmatprep.subr.mxu0 0.0
    %740 = vmatpush2.msra.mxu0 0.0
    %741 = vmatprep.subr.mxu0 0.0
    %742 = vmatpush2.msra.mxu0 0.0
    %743 = vmatprep.subr.mxu0 0.0
    %744 = vmatpush2.msra.mxu0 0.0
    %745 = vmatprep.subr.mxu0 0.0
    %746 = vmatpush2.msra.mxu0 0.0
    %747 = vmatprep.subr.mxu0 0.0
    %748 = vmatpush2.msra.mxu0 0.0
    %749 = vmatprep.subr.mxu0 0.0
    %750 = vmatpush2.msra.mxu0 0.0
    %751 = vmatprep.subr.mxu0 0.0
    %752 = vmatpush2.msra.mxu0 0.0
    %753 = vmatprep.subr.mxu0 0.0
    %754 = vmatpush2.msra.mxu0 0.0
    %755 = vmatprep.subr.mxu0 0.0
    %756 = vmatpush2.msra.mxu0 0.0
    %757 = vmatprep.subr.mxu0 0.0
    %758 = vmatpush2.msra.mxu0 0.0
    %759 = vmatprep.subr.mxu0 0.0
    %760 = vmatpush2.msra.mxu0 0.0
    %761 = vmatprep.subr.mxu0 0.0
    %762 = vmatpush2.msra.mxu0 0.0
    %763 = vmatprep.mubr.f32.mxu0 0.0
    %764 = vmatmul.mubr.f32.gmra.mxu0 %v697
    %v765 = vpop.f32.mrf.mxu0
    %v766 = vadd.f32 0.0, %v765
    %v767 = vpop.f32.mrf.mxu0
    %768 = vdwg.mxu0
    %v769 = vld [vmem:[%s2 + $0x60] sm:$0xff]
    %v770 = vld [vmem:[%s2 + $0x68] sm:$0xff]
    %v771 = vld [vmem:[%s2 + $0x70] sm:$0xff]
    %v772 = vld [vmem:[%s2 + $0x78] sm:$0xff]
    %v773 = vld [vmem:[%s2 + $0xae] sm:$0x1]
    %v774 = vlaneseq
    %v775 = vshrl.u32 %v774, 7
    %v776 = vsub.s32 0, %v775
    %v777 = vrot.slane %v773, %v776
    %v779 = vsel %vm267, %v766, 0
    %781 = vmatprep.subr.mxu0 0.0
    %782 = vmatpush1.msra.mxu0 0.0
    %783 = vmatprep.subr.mxu0 0.0
    %784 = vmatpush1.msra.mxu0 0.0
    %785 = vmatprep.subr.mxu0 0.0
    %786 = vmatpush1.msra.mxu0 0.0
    %787 = vmatprep.subr.mxu0 0.0
    %788 = vmatpush1.msra.mxu0 0.0
    %789 = vmatprep.subr.mxu0 0.0
    %790 = vmatpush1.msra.mxu0 0.0
    %791 = vmatprep.subr.mxu0 0.0
    %792 = vmatpush1.msra.mxu0 0.0
    %793 = vmatprep.subr.mxu0 0.0
    %794 = vmatpush1.msra.mxu0 0.0
    %795 = vmatprep.subr.mxu0 0.0
    %796 = vmatpush1.msra.mxu0 0.0
    %797 = vmatprep.subr.mxu0 0.0
    %798 = vmatpush1.msra.mxu0 0.0
    %799 = vmatprep.subr.mxu0 0.0
    %800 = vmatpush1.msra.mxu0 0.0
    %801 = vmatprep.subr.mxu0 0.0
    %802 = vmatpush1.msra.mxu0 0.0
    %803 = vmatprep.subr.mxu0 0.0
    %804 = vmatpush1.msra.mxu0 0.0
    %805 = vmatprep.subr.mxu0 0.0
    %806 = vmatpush1.msra.mxu0 %v772
    %807 = vmatprep.subr.mxu0 0.0
    %808 = vmatpush1.msra.mxu0 %v771
    %809 = vmatprep.subr.mxu0 0.0
    %810 = vmatpush1.msra.mxu0 %v770
    %811 = vmatprep.subr.mxu0 0.0
    %812 = vmatpush1.msra.mxu0 %v769
    %813 = vmatprep.subr.mxu0 0.0
    %814 = vmatpush2.msra.mxu0 0.0
    %815 = vmatprep.subr.mxu0 0.0
    %816 = vmatpush2.msra.mxu0 0.0
    %817 = vmatprep.subr.mxu0 0.0
    %818 = vmatpush2.msra.mxu0 0.0
    %819 = vmatprep.subr.mxu0 0.0
    %820 = vmatpush2.msra.mxu0 0.0
    %821 = vmatprep.subr.mxu0 0.0
    %822 = vmatpush2.msra.mxu0 0.0
    %823 = vmatprep.subr.mxu0 0.0
    %824 = vmatpush2.msra.mxu0 0.0
    %825 = vmatprep.subr.mxu0 0.0
    %826 = vmatpush2.msra.mxu0 0.0
    %827 = vmatprep.subr.mxu0 0.0
    %828 = vmatpush2.msra.mxu0 0.0
    %829 = vmatprep.subr.mxu0 0.0
    %830 = vmatpush2.msra.mxu0 0.0
    %831 = vmatprep.subr.mxu0 0.0
    %832 = vmatpush2.msra.mxu0 0.0
    %833 = vmatprep.subr.mxu0 0.0
    %834 = vmatpush2.msra.mxu0 0.0
    %835 = vmatprep.subr.mxu0 0.0
    %836 = vmatpush2.msra.mxu0 0.0
    %837 = vmatprep.subr.mxu0 0.0
    %838 = vmatpush2.msra.mxu0 0.0
    %839 = vmatprep.subr.mxu0 0.0
    %840 = vmatpush2.msra.mxu0 0.0
    %841 = vmatprep.subr.mxu0 0.0
    %842 = vmatpush2.msra.mxu0 0.0
    %843 = vmatprep.subr.mxu0 0.0
    %844 = vmatpush2.msra.mxu0 0.0
    %845 = vmatprep.mubr.f32.mxu0 0.0
    %846 = vmatmul.mubr.f32.gmra.mxu0 %v779
    %v847 = vpop.f32.mrf.mxu0
    %v848 = vadd.f32 %v777, %v847
    %v849 = vpop.f32.mrf.mxu0
    %850 = vdwg.mxu0
    %851 = vst [vmem:[%s3] sm:$0xff] %v848
    // Predicated region
    $region18: #{model_forward.1} parent=1 // pred_check
      _
    $region19: #{model_forward.1} parent=1 // pred_check_branch
      %853 = sbr.rel (0) target = $region21
    $region20: #{model_forward.1} parent=1 // pred_region
      _
    $region21: #{model_forward.1} parent=1 // pred_fallthru
      _
    // Predicated region
    $region22: #{model_forward.1} parent=1 // pred_check
      _
    $region23: #{model_forward.1} parent=1 // pred_check_branch
      %855 = sbr.rel (0) target = $region25
    $region24: #{model_forward.1} parent=1 // pred_region
      _
    $region25: #{model_forward.1} parent=1 // pred_fallthru
      _
    %856 = vsyncpa [#allocation3], 1

</llo_original>
